<compile_context>
chip_gen: v7x
topology: tpu7x:2x2x1
jax: 0.10.0
libtpu: 0.0.40
codegen_flags: <defaults>
</compile_context>

<pallas_src>
import jax
import jax.numpy as jnp
from jax.experimental import pallas as pl
from jax.experimental.pallas import tpu as pltpu


def _random_model_kernel(x_ref, w_ref, b_ref, o_ref):
    # x_ref: (TB, D) native dtype | w_ref: (1, D) f32 lane-dense
    # b_ref: (1,) f32 in SMEM     | o_ref: (TB, 1) int8 (0/1)
    x = x_ref[...].astype(jnp.float32)                     # per-tile cast (torch .float())
    # Lane-dense mat-vec: VPU multiply + XLU lane reduction (no N=1 MXU pass,
    # no (D, 1) -> D x 512 B VMEM padding blow-up).
    z = jnp.sum(x * w_ref[...], axis=-1, keepdims=True)    # (TB, 1) f32
    # sigmoid(z + b) > 0.5  <=>  z + b > 0   (sigmoid elided; exact predicate)
    o_ref[...] = ((z + b_ref[0]) > 0.0).astype(jnp.int8)


def _round_up(x, m):
    return ((x + m - 1) // m) * m


def _vmem_capacity_bytes():
    """Per-core VMEM capacity; conservative fallback if the query fails."""
    try:
        return int(pltpu.get_tpu_info().vmem_capacity_bytes)
    except Exception:
        return 64 * 1024 * 1024                            # v7x per-TC (smallest current gen)


def _choose_tb(B, D, itemsize, per_buf_bytes):
    """Batch-tile rows: biggest tile within the per-buffer VMEM budget, while
    keeping >= ~8 grid steps (>= 4 per TensorCore under megacore) for large B."""
    rows_vmem = per_buf_bytes // (itemsize * D)            # budget in NATIVE-dtype rows
    rows_steps = -(-B // 8)                                 # ceil(B / 8)
    rows = min(rows_vmem, rows_steps)
    rows = max(32, (rows // 32) * 32)                       # 32-row align: safe for f32/bf16/i8 tiles
    if B <= rows:
        return B                                            # full-extent block is always legal
    return rows


def random_model_forward(x, weight, bias):
    """x: (B, C, H, W) any float/int dtype. weight: (1, D). bias: (1,). Returns bool (B, 1)."""
    B = x.shape[0]
    x_flat = x.reshape(B, -1)                               # glue: flatten(start_dim=1), native dtype
    D = x_flat.shape[1]
    itemsize = x_flat.dtype.itemsize

    w = weight.astype(jnp.float32).reshape(1, D)            # lane-dense weight row
    b = bias.astype(jnp.float32).reshape(1)                 # scalar bias -> SMEM

    # Generation-aware tile budget: ~2x20 MiB of x double-buffers on v7x
    # (64 MiB/TC), ~2x14 MiB on v5e/v6e (128 MiB VMEM, slower HBM).
    cap = _vmem_capacity_bytes()
    per_buf = (20 << 20) if cap <= (96 << 20) else (14 << 20)
    TB = _choose_tb(B, D, itemsize, per_buf)
    grid = (pl.cdiv(B, TB),)

    # Explicit scoped-VMEM limit so the bigger tiles compile everywhere
    # (v5e default is only 16 MiB; physical is 128 MiB).
    x_buf = TB * D * itemsize                               # one x buffer (native dtype)
    w_buf = 8 * _round_up(D, 128) * 4                       # (1, D) f32 padded to (8, ceil128)
    o_buf = _round_up(TB, 32) * 128                         # (TB, 1) i8 tile, generous padding
    need = 2 * x_buf + 2 * w_buf + 2 * o_buf + (4 << 20)    # double-buffered + slack
    vmem_limit = min(cap, max(need, 32 << 20))

    out_i8 = pl.pallas_call(
        _random_model_kernel,
        out_shape=jax.ShapeDtypeStruct((B, 1), jnp.int8),
        grid_spec=pltpu.PrefetchScalarGridSpec(
            num_scalar_prefetch=0,
            grid=grid,
            in_specs=[
                pl.BlockSpec((TB, D), lambda i: (i, 0)),               # x tile, streamed
                pl.BlockSpec((1, D), lambda i: (0, 0)),                # weight row, resident
                pl.BlockSpec(memory_space=pltpu.MemorySpace.SMEM),     # bias scalar
            ],
            out_specs=pl.BlockSpec((TB, 1), lambda i: (i, 0)),
        ),
        compiler_params=pltpu.CompilerParams(
            dimension_semantics=("parallel",),              # megacore batch split on v7x
            vmem_limit_bytes=int(vmem_limit),
        ),
        cost_estimate=pl.CostEstimate(
            flops=2 * B * D,
            bytes_accessed=x_flat.size * itemsize + 4 * D + 4 + B,
            transcendentals=0,
        ),
    )(x_flat, w, b)

    # Glue: 0/1 int8 -> bool, matching torch's (sigmoid(.) > 0.5) output dtype.
    # NOTE: sigmoid(z) > 0.5 <=> z > 0 is mathematically exact, but not
    # bit-identical to a literal f32 sigmoid when |z| ~ 1e-7 rounds to 0.5.
    return out_i8.astype(jnp.bool_)


def init_params(key, input_size):
    """torch.nn.Linear(input_size, 1) default init: U(-1/sqrt(D), 1/sqrt(D))."""
    kw, kb = jax.random.split(key)
    bound = 1.0 / jnp.sqrt(jnp.float32(input_size))
    weight = jax.random.uniform(kw, (1, input_size), jnp.float32, -bound, bound)
    bias = jax.random.uniform(kb, (1,), jnp.float32, -bound, bound)
    return weight, bias


if __name__ == "__main__":
    key = jax.random.PRNGKey(0)
    kx, kp = jax.random.split(key)

    B, C, H, W = 2, 4, 16, 16
    input_size = C * H * W

    x = jax.random.normal(kx, (B, C, H, W), jnp.float32)
    weight, bias = init_params(kp, input_size)

    out = random_model_forward(x, weight, bias)
    out = jax.block_until_ready(out)

    # Reference check in plain JAX (original sigmoid > 0.5 formulation).
    ref = jax.nn.sigmoid(x.reshape(B, -1).astype(jnp.float32) @ weight.T + bias) > 0.5
    assert out.shape == (B, 1) and out.dtype == jnp.bool_
    assert bool(jnp.all(out == ref))

    print("KERNEL_OK")
</pallas_src>

<mosaic_0001>
module attributes {stable_mosaic.version = 11 : i64} {
  func.func @_random_model_kernel(%arg0: i32, %arg1: memref<2x1024xf32, #tpu.memory_space<vmem>>, %arg2: memref<1x1024xf32, #tpu.memory_space<vmem>>, %arg3: memref<1xf32, #tpu.memory_space<smem>>, %arg4: memref<2x1xi8, #tpu.memory_space<vmem>>) attributes {dimension_semantics = [#tpu.dimension_semantics<parallel>], iteration_bounds = array<i64: 1>, scalar_prefetch = 0 : i64, scratch_operands = 0 : i64, tpu.core_type = #tpu.core_type<tc>, window_params = [{transform_indices = @transform_0, window_bounds = array<i64: 2, 1024>}, {pipeline_mode = #tpu.pipeline_mode<synchronous>, transform_indices = @transform_1, window_bounds = array<i64: 1, 1024>}, {transform_indices = @transform_2, window_bounds = array<i64: 1>}, {transform_indices = @transform_3, window_bounds = array<i64: 2, 1>}]} {
    %c0 = arith.constant 0 : index
    %c0_0 = arith.constant 0 : index
    %0 = vector.load %arg1[%c0, %c0_0] : memref<2x1024xf32, #tpu.memory_space<vmem>>, vector<2x1024xf32>
    %c0_1 = arith.constant 0 : index
    %c0_2 = arith.constant 0 : index
    %1 = vector.load %arg2[%c0_1, %c0_2] : memref<1x1024xf32, #tpu.memory_space<vmem>>, vector<1x1024xf32>
    %2 = vector.broadcast %1 : vector<1x1024xf32> to vector<2x1024xf32>
    %3 = arith.mulf %0, %2 : vector<2x1024xf32>
    %cst = arith.constant dense<0.000000e+00> : vector<2xf32>
    %4 = vector.multi_reduction <add>, %3, %cst [1] : vector<2x1024xf32> to vector<2xf32>
    %5 = vector.shape_cast %4 : vector<2xf32> to vector<2x1xf32>
    %c0_3 = arith.constant 0 : index
    %6 = memref.load %arg3[%c0_3] : memref<1xf32, #tpu.memory_space<smem>>
    %7 = vector.broadcast %6 : f32 to vector<2x1xf32>
    %8 = arith.addf %5, %7 : vector<2x1xf32>
    %cst_4 = arith.constant 0.000000e+00 : f32
    %9 = vector.broadcast %cst_4 : f32 to vector<2x1xf32>
    %10 = arith.cmpf ogt, %8, %9 : vector<2x1xf32>
    %11 = arith.extui %10 : vector<2x1xi1> to vector<2x1xi8>
    %c0_5 = arith.constant 0 : index
    %c0_6 = arith.constant 0 : index
    %12 = vector.load %arg4[%c0_5, %c0_6] : memref<2x1xi8, #tpu.memory_space<vmem>>, vector<2x1xi8>
    tpu.vector_store %arg4[%c0_5, %c0_6], %11 {strides = array<i32>} : memref<2x1xi8, #tpu.memory_space<vmem>>, vector<2x1xi8>,
    return
  }
  func.func @transform_0(%arg0: i32) -> (i32, i32) {
    %c0_i32 = arith.constant 0 : i32
    %c0_i32_0 = arith.constant 0 : i32
    return %arg0, %c0_i32 : i32, i32
  }
  func.func @transform_1(%arg0: i32) -> (i32, i32) {
    %c0_i32 = arith.constant 0 : i32
    %c0_i32_0 = arith.constant 0 : i32
    %c0_i32_1 = arith.constant 0 : i32
    return %c0_i32, %c0_i32_0 : i32, i32
  }
  func.func @transform_2(%arg0: i32) -> i32 {
    %c0_i32 = arith.constant 0 : i32
    %c0_i32_0 = arith.constant 0 : i32
    return %c0_i32 : i32
  }
  func.func @transform_3(%arg0: i32) -> (i32, i32) {
    %c0_i32 = arith.constant 0 : i32
    %c0_i32_0 = arith.constant 0 : i32
    return %arg0, %c0_i32 : i32, i32
  }
}

</mosaic_0001>

<llo_original>
// kernel: tpu_custom_call.1
$region0: #{tpu_custom_call.1}
  #allocation0 [shape = 'u32[]', space=smem, size = 0x4, offset = 0x4, fixed_abs, tag = 'smem constant byte address 0x4 - core index']
  #allocation1 [shape = 'u32[144,128]{1,0:T(1,128)}', space=vmem, size = 0x12000, scoped, tag = 'internal scratch']
  #allocation2 [shape = 'f32[1]{0:T(128)S(6)}', space=smem, size = 0x200, scoped, tag = 'scoped memory for tpu_custom_call.1']
  %s0 = inlined_call_operand.hbm [shape: f32[2,1024], index: 0, kind: input, shape index: {}]
  %s1 = inlined_call_operand.hbm [shape: f32[1,1024], index: 1, kind: input, shape index: {}]
  %s2 = inlined_call_operand.<no memory space> [shape: f32[1], index: 2, kind: input, shape index: {}]
  %s3 = inlined_call_operand.hbm [shape: s8[2,1], index: 3, kind: output, shape index: {}]
  %s4 = sld [smem:[#allocation0]]
  $region30: #{tpu_custom_call.1} parent=0
    _
  %s6 = ssub.s32 1, %s4
  %s7 = scalar_select 0, %s6, %s4
  %8 = sst [smem:[#allocation2]] %s2
  $region1: #{tpu_custom_call.1} parent=0
    #allocation3 [shape = 'u8[8192]{0}', space=vmem, size = 0x2000, scoped, tag = 'input window, operand 0, single buffered']
    #allocation4 [shape = 's32[1]{0}', space=sflag, size = 0x4, scoped, tag = 'scoped memory for tpu_custom_call.1']
    #allocation5 [shape = 's32[1]{0}', space=sflag, size = 0x4, scoped, tag = 'scoped memory for tpu_custom_call.1']
    #allocation6 [shape = 'u8[4096]{0}', space=vmem, size = 0x1000, scoped, tag = 'input window, operand 1, single buffered']
    #allocation7 [shape = 's32[1]{0}', space=sflag, size = 0x4, scoped, tag = 'scoped memory for tpu_custom_call.1']
    #allocation8 [shape = 'u8[512]{0}', space=vmem, size = 0x400, scoped, tag = 'output window, operand 0, single buffered']
    %9 = vsyncpa [#allocation4], 0
    %10 = vsyncpa [#allocation7], 0
    %11 = vsyncpa [#allocation5], 0
    // Predicated region
    $region2: #{tpu_custom_call.1} parent=1 // pred_check
      _
    $region3: #{tpu_custom_call.1} parent=1 // pred_check_branch
      %13 = sbr.rel (0) target = $region5
    $region4: #{tpu_custom_call.1} parent=1 // pred_region
      %s15 = ssub.s32 256, 256
      %16 = vsyncadd [#allocation4], %s15
      %s18 = sshll.u32 [#allocation3], 4
      %s19 = int_to_ptr.vmem [resolvable:$true] %s18
      %21 = dma.hbm_to_vmem [thread:$0]  %s0, 256, %s19, [#allocation4]
    $region5: #{tpu_custom_call.1} parent=1 // pred_fallthru
      _
    // Predicated region
    $region6: #{tpu_custom_call.1} parent=1 // pred_check
      _
    $region7: #{tpu_custom_call.1} parent=1 // pred_check_branch
      %23 = sbr.rel (0) target = $region9
    $region8: #{tpu_custom_call.1} parent=1 // pred_region
      %s25 = ssub.s32 128, 128
      %26 = vsyncadd [#allocation7], %s25
      %s28 = sshll.u32 [#allocation6], 4
      %s29 = int_to_ptr.vmem [resolvable:$true] %s28
      %31 = dma.hbm_to_vmem [thread:$0]  %s1, 128, %s29, [#allocation7]
    $region9: #{tpu_custom_call.1} parent=1 // pred_fallthru
      _
    // Predicated region
    $region10: #{tpu_custom_call.1} parent=1 // pred_check
      _
    $region11: #{tpu_custom_call.1} parent=1 // pred_check_branch
      %33 = sbr.rel (0) target = $region13
    $region12: #{tpu_custom_call.1} parent=1 // pred_region
      _
    $region13: #{tpu_custom_call.1} parent=1 // pred_fallthru
      _
    // Predicated region
    $region14: #{tpu_custom_call.1} parent=1 // pred_check
      _
    $region15: #{tpu_custom_call.1} parent=1 // pred_check_branch
      %35 = sbr.rel (0) target = $region17
    $region16: #{tpu_custom_call.1} parent=1 // pred_region
      %36 = dma.done [#allocation4], 256
    $region17: #{tpu_custom_call.1} parent=1 // pred_fallthru
      _
    // Predicated region
    $region18: #{tpu_custom_call.1} parent=1 // pred_check
      _
    $region19: #{tpu_custom_call.1} parent=1 // pred_check_branch
      %38 = sbr.rel (0) target = $region21
    $region20: #{tpu_custom_call.1} parent=1 // pred_region
      %39 = dma.done [#allocation7], 128
    $region21: #{tpu_custom_call.1} parent=1 // pred_fallthru
      _
    %v42 = vld [vmem:[#allocation3] sm:$0xff]
    %v43 = vld [vmem:[#allocation3 + $0x8] sm:$0xff]
    %v44 = vld [vmem:[#allocation6] sm:$0xff]
    %v46 = vlaneseq
    %v47 = vshrl.u32 %v46, 7
    %v48 = vsub.s32 0, %v47
    %v49 = vrot.slane %v44, %v48
    %v50 = vlaneseq
    %v51 = vshrl.u32 %v50, 7
    %v52 = vsub.s32 1, %v51
    %v53 = vrot.slane %v44, %v52
    %v54 = vlaneseq
    %v55 = vshrl.u32 %v54, 7
    %v56 = vsub.s32 2, %v55
    %v57 = vrot.slane %v44, %v56
    %v58 = vlaneseq
    %v59 = vshrl.u32 %v58, 7
    %v60 = vsub.s32 3, %v59
    %v61 = vrot.slane %v44, %v60
    %v62 = vlaneseq
    %v63 = vshrl.u32 %v62, 7
    %v64 = vsub.s32 4, %v63
    %v65 = vrot.slane %v44, %v64
    %v66 = vlaneseq
    %v67 = vshrl.u32 %v66, 7
    %v68 = vsub.s32 5, %v67
    %v69 = vrot.slane %v44, %v68
    %v70 = vlaneseq
    %v71 = vshrl.u32 %v70, 7
    %v72 = vsub.s32 6, %v71
    %v73 = vrot.slane %v44, %v72
    %v74 = vlaneseq
    %v75 = vshrl.u32 %v74, 7
    %v76 = vsub.s32 7, %v75
    %v77 = vrot.slane %v44, %v76
    %v78 = vcombine.low %v49, %v53
    %v79 = vcombine.low %v57, %v61
    %v81 = vunpack.c.l.s4 1983009808
    %v82 = vunpack.c.0.s8 %v81
    %v83 = vlaneseq
    %v84 = vshrl.u32 %v83, 7
    %v85 = vsub.s32 %v82, %v84
    %v86 = vrot.slane %v78, %v85
    %v88 = vunpack.c.l.s4 1983009808
    %v89 = vunpack.c.0.s8 %v88
    %v90 = vlaneseq
    %v91 = vshrl.u32 %v90, 7
    %v92 = vsub.s32 %v89, %v91
    %v93 = vrot.slane %v79, %v92
    %v94 = vcombine.low %v86, %v93
    %v95 = vcombine.low %v65, %v69
    %v96 = vcombine.low %v73, %v77
    %v98 = vunpack.c.l.s4 1983009808
    %v99 = vunpack.c.0.s8 %v98
    %v100 = vlaneseq
    %v101 = vshrl.u32 %v100, 7
    %v102 = vsub.s32 %v99, %v101
    %v103 = vrot.slane %v95, %v102
    %v105 = vunpack.c.l.s4 1983009808
    %v106 = vunpack.c.0.s8 %v105
    %v107 = vlaneseq
    %v108 = vshrl.u32 %v107, 7
    %v109 = vsub.s32 %v106, %v108
    %v110 = vrot.slane %v96, %v109
    %v111 = vcombine.low %v103, %v110
    %v114 = vmul.f32 %v42, %v94
    %v115 = vmul.f32 %v43, %v111
    %v118 = vcombine.high %v114, %v114
    %v120 = vunpack.c.l.s4 1983009808
    %v121 = vunpack.c.0.s8 %v120
    %v122 = vlaneseq
    %v123 = vshrl.u32 %v122, 7
    %v124 = vsub.s32 %v121, %v123
    %v125 = vrot.slane %v114, %v124
    %v127 = vunpack.c.l.s4 1983009808
    %v128 = vunpack.c.0.s8 %v127
    %v129 = vlaneseq
    %v130 = vshrl.u32 %v129, 7
    %v131 = vsub.s32 %v128, %v130
    %v132 = vrot.slane %v118, %v131
    %v133 = vcombine.high %v125, %v125
    %v134 = vcombine.high %v132, %v132
    %v135 = vcombine.high %v115, %v115
    %v137 = vunpack.c.l.s4 1983009808
    %v138 = vunpack.c.0.s8 %v137
    %v139 = vlaneseq
    %v140 = vshrl.u32 %v139, 7
    %v141 = vsub.s32 %v138, %v140
    %v142 = vrot.slane %v115, %v141
    %v144 = vunpack.c.l.s4 1983009808
    %v145 = vunpack.c.0.s8 %v144
    %v146 = vlaneseq
    %v147 = vshrl.u32 %v146, 7
    %v148 = vsub.s32 %v145, %v147
    %v149 = vrot.slane %v135, %v148
    %v150 = vcombine.high %v142, %v142
    %v151 = vcombine.high %v149, %v149
    %vm160 = vcmask 1041408
    %v161 = vsel %vm160, %v125, 0.0
    %v162 = vsel %vm160, %v133, 0.0
    %v163 = vadd.f32 %v161, %v162
    %v164 = vsel %vm160, %v132, 0.0
    %v165 = vadd.f32 %v163, %v164
    %v166 = vsel %vm160, %v134, 0.0
    %v167 = vadd.f32 %v165, %v166
    %v168 = vsel %vm160, %v142, 0.0
    %v169 = vadd.f32 %v167, %v168
    %v170 = vsel %vm160, %v150, 0.0
    %v171 = vadd.f32 %v169, %v170
    %v172 = vsel %vm160, %v149, 0.0
    %v173 = vadd.f32 %v171, %v172
    %v174 = vsel %vm160, %v151, 0.0
    %v175 = vadd.f32 %v173, %v174
    %176 = vadd.xlane.f32.xlu0 %v175
    %v177 = vpop.xlane.xlu0 %176
    %s178 = sld [smem:[#allocation2]]
    %v179 = vstv %s178
    %v180 = vadd.f32 %v177, %v179
    %vm181 = vcmp.gt.f32.partialorder %v180, 0.0
    %vm182 = vmpackc.low %vm181, %vm181
    %vm183 = vmpackc.even %vm182, %vm182
    %v184 = vsel %vm183, 16843009, 0
    %vm185 = vcmask 0
    %vm186 = vsmask.f32 256
    %vm187 = vmand %vm185, %vm186
    %v188 = vld [vmem:[#allocation8] sm:$0x1]
    %v189 = vsel %vm187, %v184, %v188
    %190 = vst [vmem:[#allocation8] sm:$0x1] %v189
    // Predicated region
    $region22: #{tpu_custom_call.1} parent=1 // pred_check
      _
    $region23: #{tpu_custom_call.1} parent=1 // pred_check_branch
      %192 = sbr.rel (0) target = $region25
    $region24: #{tpu_custom_call.1} parent=1 // pred_region
      %s194 = ssub.s32 16, 16
      %195 = vsyncadd [#allocation5], %s194
      %s197 = sshll.u32 [#allocation8], 4
      %s198 = int_to_ptr.vmem [resolvable:$true] %s197
      %200 = dma.vmem_to_hbm [thread:$0]  %s198, 16, %s3, [#allocation5]
    $region25: #{tpu_custom_call.1} parent=1 // pred_fallthru
      _
    // Predicated region
    $region26: #{tpu_custom_call.1} parent=1 // pred_check
      _
    $region27: #{tpu_custom_call.1} parent=1 // pred_check_branch
      %202 = sbr.rel (0) target = $region29
    $region28: #{tpu_custom_call.1} parent=1 // pred_region
      %203 = dma.done [#allocation5], 16
    $region29: #{tpu_custom_call.1} parent=1 // pred_fallthru
      _
    %204 = vsyncpa [#allocation4], 1
    %205 = vsyncpa [#allocation7], 1
    %206 = vsyncpa [#allocation5], 1

</llo_original>
